<compile_context>
chip_gen: v5e
topology: v5e:2x2
jax: 0.10.0
libtpu: 0.0.40
codegen_flags: <defaults>
</compile_context>

<pallas_src>
import math
from functools import partial

import numpy as np
import jax
import jax.numpy as jnp
from jax.experimental import pallas as pl
from jax.experimental.pallas import tpu as pltpu


def _bbox_kernel(x_ref, p_ref, o_ref):
    # x_ref: (TILE_ROWS, LANE)  lane-dense flat view of the points
    # p_ref: (2, LANE)          row 0 = box_min tiled, row 1 = 1/box_size tiled
    x = x_ref[...].astype(jnp.float32)
    bmin = p_ref[0:1, :]
    inv = p_ref[1:2, :]
    o_ref[...] = ((x - bmin) * inv).astype(o_ref.dtype)


def _pick_tile(rows, tile_rows):
    """Row-tile: large enough to amortize the ~0.35us per-grid-step overhead,
    small enough to double-buffer in VMEM, and always >= 2 grid steps when
    rows >= 16 so the grid axis can shard across v7x's two TensorCores."""
    tile = min(tile_rows, rows)
    if rows >= 16:
        tile = min(tile, max(8, (rows // 2 // 8) * 8))
    if tile != rows:
        tile = max(8, (tile // 8) * 8)
    return tile


@partial(jax.jit, static_argnames=("dims", "lane", "tile_rows"))
def _bbox_forward(x, params, *, dims, lane, tile_rows):
    orig_shape = x.shape
    in_dtype = x.dtype
    out_dtype = in_dtype if jnp.issubdtype(in_dtype, jnp.floating) else jnp.float32

    flat = x.reshape(-1)
    total = flat.shape[0]
    bulk_rows = total // lane          # static under jit
    rem = total - bulk_rows * lane     # static under jit; multiple of dims

    pieces = []

    if bulk_rows > 0:
        bulk_elems = bulk_rows * lane
        bulk_flat = flat if rem == 0 else flat[:bulk_elems]
        bulk = bulk_flat.reshape(bulk_rows, lane)

        tile = _pick_tile(bulk_rows, tile_rows)
        num_tiles = pl.cdiv(bulk_rows, tile)

        in_bytes = bulk_elems * np.dtype(in_dtype).itemsize
        out_bytes = bulk_elems * np.dtype(out_dtype).itemsize
        cost = pl.CostEstimate(
            flops=2 * bulk_elems,
            transcendentals=0,
            bytes_accessed=in_bytes + out_bytes,
        )

        bulk_out = pl.pallas_call(
            _bbox_kernel,
            out_shape=jax.ShapeDtypeStruct((bulk_rows, lane), out_dtype),
            grid=(num_tiles,),
            in_specs=[
                pl.BlockSpec((tile, lane), lambda i: (i, 0)),
                # constant index_map -> params fetched once, not re-DMA'd per step
                pl.BlockSpec((2, lane), lambda i: (0, 0)),
            ],
            out_specs=pl.BlockSpec((tile, lane), lambda i: (i, 0)),
            compiler_params=pltpu.CompilerParams(
                dimension_semantics=("parallel",),
                vmem_limit_bytes=48 * 1024 * 1024,
            ),
            cost_estimate=cost,
        )(bulk, params)
        pieces.append(bulk_out.reshape(-1))

    if rem > 0:
        # < LANE-element tail: handled in plain JAX (rem is a multiple of dims).
        tail = flat[total - rem:].reshape(-1, dims).astype(jnp.float32)
        bmin = params[0, :dims]
        inv = params[1, :dims]
        pieces.append(((tail - bmin) * inv).astype(out_dtype).reshape(-1))

    out_flat = pieces[0] if len(pieces) == 1 else jnp.concatenate(pieces)
    return out_flat.reshape(orig_shape)


class BBox:
    """JAX/Pallas port of the PyTorch BBox module (dims-dim axis-aligned box)."""

    def __init__(self, box_size=None, box_min=None, box_max=None,
                 box_center=None, dims=3):
        self.dims = dims

        # Host-side (numpy) construction: no device sync for the sanity assert.
        def brd_cst(v):
            return np.broadcast_to(np.asarray(v, dtype=np.float32), (dims,)).copy()

        if box_size is not None:
            size = brd_cst(box_size)
            center = brd_cst(0.0) if box_center is None else brd_cst(box_center)
        else:
            assert box_min is not None and box_max is not None
            size = brd_cst(box_max) - brd_cst(box_min)
            center = (brd_cst(box_max) + brd_cst(box_min)) / 2.0
        bmin = center - size / 2.0
        assert np.all(size > 0)  # host-side check, no device round-trip

        self.box_size = jnp.asarray(size)
        self.box_center = jnp.asarray(center)
        self.box_min = jnp.asarray(bmin)

        # Merged lane-dense parameter slab (2, LANE): period-`dims` pattern
        # tiled across LANE = lcm(dims, 128) lanes; row 1 holds the
        # host-precomputed reciprocal of box_size.
        lane = dims * (128 // math.gcd(dims, 128))
        self._lane = lane
        reps = lane // dims
        inv_size = (1.0 / size).astype(np.float32)
        params = np.stack([np.tile(bmin, reps), np.tile(inv_size, reps)], axis=0)
        self._params = jnp.asarray(params)  # (2, LANE) float32

    def inv(self, local_x):
        # inverse map (plain JAX glue; not the hot path)
        return local_x * self.box_size + self.box_min

    def __call__(self, x):
        return self.forward(x)

    def forward(self, x, tile_rows=2048):
        assert x.shape[-1] == self.dims
        return _bbox_forward(x, self._params, dims=self.dims,
                             lane=self._lane, tile_rows=tile_rows)


if __name__ == "__main__":
    key = jax.random.PRNGKey(0)
    # deterministic box parameters (synthetic; no checkpoint load)
    bbox = BBox(box_min=-1.0, box_max=1.5, dims=3)

    k1, k2, k3 = jax.random.split(key, 3)

    # Case 1: lane-aligned point count (pure Pallas path, >= 2 grid steps).
    x1 = jax.random.uniform(k1, (2, 1024, 3), dtype=jnp.float32,
                            minval=-1.0, maxval=1.5)
    y1 = jax.block_until_ready(bbox(x1))
    ref1 = (x1 - bbox.box_min) / bbox.box_size
    assert y1.shape == x1.shape and y1.dtype == x1.dtype
    assert jnp.allclose(y1, ref1, atol=1e-6, rtol=1e-5)

    # Case 2: ragged point count (Pallas bulk + small plain-JAX tail, no pad).
    x2 = jax.random.uniform(k2, (5, 100, 3), dtype=jnp.float32,
                            minval=-1.0, maxval=1.5)
    y2 = jax.block_until_ready(bbox(x2))
    ref2 = (x2 - bbox.box_min) / bbox.box_size
    assert y2.shape == x2.shape and y2.dtype == x2.dtype
    assert jnp.allclose(y2, ref2, atol=1e-6, rtol=1e-5)

    # Case 3: tiny point cloud (< one lane row -> pure JAX tail path).
    x3 = jax.random.uniform(k3, (2, 16, 3), dtype=jnp.float32,
                            minval=-1.0, maxval=1.5)
    y3 = jax.block_until_ready(bbox(x3))
    ref3 = (x3 - bbox.box_min) / bbox.box_size
    assert y3.shape == x3.shape and y3.dtype == x3.dtype
    assert jnp.allclose(y3, ref3, atol=1e-6, rtol=1e-5)

    print("KERNEL_OK")
</pallas_src>

<mosaic_0001>
module attributes {stable_mosaic.version = 11 : i64} {
  func.func @_bbox_kernel(%arg0: i32, %arg1: memref<8x384xf32, #tpu.memory_space<vmem>>, %arg2: memref<2x384xf32, #tpu.memory_space<vmem>>, %arg3: memref<8x384xf32, #tpu.memory_space<vmem>>) attributes {dimension_semantics = [#tpu.dimension_semantics<parallel>], iteration_bounds = array<i64: 2>, scalar_prefetch = 0 : i64, scratch_operands = 0 : i64, tpu.core_type = #tpu.core_type<tc>, window_params = [{transform_indices = @transform_0, window_bounds = array<i64: 8, 384>}, {pipeline_mode = #tpu.pipeline_mode<synchronous>, transform_indices = @transform_1, window_bounds = array<i64: 2, 384>}, {transform_indices = @transform_2, window_bounds = array<i64: 8, 384>}]} {
    %c0 = arith.constant 0 : index
    %c0_0 = arith.constant 0 : index
    %0 = vector.load %arg1[%c0, %c0_0] : memref<8x384xf32, #tpu.memory_space<vmem>>, vector<8x384xf32>
    %c0_1 = arith.constant 0 : index
    %c0_2 = arith.constant 0 : index
    %1 = vector.load %arg2[%c0_1, %c0_2] : memref<2x384xf32, #tpu.memory_space<vmem>>, vector<1x384xf32>
    %c1 = arith.constant 1 : index
    %c0_3 = arith.constant 0 : index
    %2 = vector.load %arg2[%c1, %c0_3] : memref<2x384xf32, #tpu.memory_space<vmem>>, vector<1x384xf32>
    %3 = vector.broadcast %1 : vector<1x384xf32> to vector<8x384xf32>
    %4 = arith.subf %0, %3 : vector<8x384xf32>
    %5 = vector.broadcast %2 : vector<1x384xf32> to vector<8x384xf32>
    %6 = arith.mulf %4, %5 : vector<8x384xf32>
    %c0_4 = arith.constant 0 : index
    %c0_5 = arith.constant 0 : index
    %7 = vector.load %arg3[%c0_4, %c0_5] : memref<8x384xf32, #tpu.memory_space<vmem>>, vector<8x384xf32>
    tpu.vector_store %arg3[%c0_4, %c0_5], %6 {strides = array<i32>} : memref<8x384xf32, #tpu.memory_space<vmem>>, vector<8x384xf32>,
    return
  }
  func.func @transform_0(%arg0: i32) -> (i32, i32) {
    %c0_i32 = arith.constant 0 : i32
    %c0_i32_0 = arith.constant 0 : i32
    return %arg0, %c0_i32 : i32, i32
  }
  func.func @transform_1(%arg0: i32) -> (i32, i32) {
    %c0_i32 = arith.constant 0 : i32
    %c0_i32_0 = arith.constant 0 : i32
    %c0_i32_1 = arith.constant 0 : i32
    return %c0_i32, %c0_i32_0 : i32, i32
  }
  func.func @transform_2(%arg0: i32) -> (i32, i32) {
    %c0_i32 = arith.constant 0 : i32
    %c0_i32_0 = arith.constant 0 : i32
    return %arg0, %c0_i32 : i32, i32
  }
}

</mosaic_0001>

<llo_original>
// kernel: _bbox_forward.1
$region0: #{_bbox_forward.1}
  #allocation0 [shape = 'u32[]', space=smem, size = 0x4, offset = 0x4, fixed_abs, tag = 'smem constant byte address 0x4 - core index']
  #allocation1 [shape = 'u32[72,128]{1,0:T(1,128)}', space=vmem, size = 0x9000, scoped, tag = 'internal scratch']
  %s0 = inlined_call_operand.vmem [shape: f32[16,384], index: 0, kind: input, shape index: {}]
  %s1 = inlined_call_operand.vmem [shape: f32[2,384], index: 1, kind: input, shape index: {}]
  %s2 = inlined_call_operand.vmem [shape: f32[16,384], index: 2, kind: output, shape index: {}]
  %s3 = sld [smem:[#allocation0]]
  $region41: #{_bbox_forward.1} parent=0
    _
  %s5 = ssub.s32 1, %s3
  %s6 = scalar_select 0, %s5, %s3
  loop: start=0, step=1, limit=4
  $region2: #{_bbox_forward.1} parent=0 // loop_pre_header
    _
  $region3: #{_bbox_forward.1} parent=0 // loop_header
    %s8 = sphi 0, %s12
    %p9 = scmp.ge.s32.totalorder %s8, 4
    %s18 = sphi 0, %s20
    %s21 = sphi 0, %s18
    %s22 = sphi 0, %s21
    %s38 = sphi 0, %s22
    %s42 = sphi 0, %s42
    %s44 = sphi 0, %s42
    %s45 = sphi 0, %s44
    %s59 = sphi 0, %s45
    %s65 = sphi 0, %s67
    %s68 = sphi 0, %s65
    %s69 = sphi 0, %s68
    %s85 = sphi 0, %s69
  $region4: #{_bbox_forward.1} parent=0 // loop_header_branch
    %11 = sbr.rel (%p9) target = $region8
  $region5: #{_bbox_forward.1} parent=0 // loop_body
    %s13 = ssub.s32 %s8, 1
    %s14 = ssub.s32 %s8, 2
    %s15 = sadd.s32 %s8, 1
    %s16 = ssub.s32 %s8, %s15
    %p17 = scmp.eq.s32.totalorder %s16, 0
    %s19 = sadd.s32 %s18, 1
    %s20 = scalar_select %p17, %s18, %s19
    %p23 = pneg %p17
    %p24 = scmp.eq.s32.totalorder %s8, 1
    %p25 = por %p23, %p24
    %p26 = scmp.ne.s32.totalorder %s18, %s21
    %p27 = scmp.eq.s32.totalorder %s8, 0
    %p28 = por %p26, %p27
    %p29 = scmp.ne.s32.totalorder %s18, %s21
    %p30 = scmp.eq.s32.totalorder %s13, 1
    %p31 = por %p29, %p30
    %p32 = scmp.ne.s32.totalorder %s21, %s22
    %p33 = scmp.eq.s32.totalorder %s13, 0
    %p34 = por %p32, %p33
    %p35 = scmp.ne.s32.totalorder %s21, %s22
    %p36 = scmp.eq.s32.totalorder %s14, 1
    %p37 = por %p35, %p36
    %p39 = scmp.ne.s32.totalorder %s22, %s38
    %p40 = scmp.eq.s32.totalorder %s14, 0
    %p41 = por %p39, %p40
    %s43 = sadd.s32 %s42, 1
    %p46 = scmp.eq.s32.totalorder %s8, 1
    %p47 = scmp.ne.s32.totalorder %s42, %s44
    %p48 = scmp.eq.s32.totalorder %s8, 0
    %p49 = por %p47, %p48
    %p50 = scmp.ne.s32.totalorder %s42, %s44
    %p51 = scmp.eq.s32.totalorder %s13, 1
    %p52 = por %p50, %p51
    %p53 = scmp.ne.s32.totalorder %s44, %s45
    %p54 = scmp.eq.s32.totalorder %s13, 0
    %p55 = por %p53, %p54
    %p56 = scmp.ne.s32.totalorder %s44, %s45
    %p57 = scmp.eq.s32.totalorder %s14, 1
    %p58 = por %p56, %p57
    %p60 = scmp.ne.s32.totalorder %s45, %s59
    %p61 = scmp.eq.s32.totalorder %s14, 0
    %p62 = por %p60, %p61
    %s63 = ssub.s32 %s8, %s15
    %p64 = scmp.eq.s32.totalorder %s63, 0
    %s66 = sadd.s32 %s65, 1
    %s67 = scalar_select %p64, %s65, %s66
    %p70 = pneg %p64
    %p71 = scmp.eq.s32.totalorder %s8, 1
    %p72 = por %p70, %p71
    %p73 = scmp.ne.s32.totalorder %s65, %s68
    %p74 = scmp.eq.s32.totalorder %s8, 0
    %p75 = por %p73, %p74
    %p76 = scmp.ne.s32.totalorder %s65, %s68
    %p77 = scmp.eq.s32.totalorder %s13, 1
    %p78 = por %p76, %p77
    %p79 = scmp.ne.s32.totalorder %s68, %s69
    %p80 = scmp.eq.s32.totalorder %s13, 0
    %p81 = por %p79, %p80
    %p82 = scmp.ne.s32.totalorder %s68, %s69
    %p83 = scmp.eq.s32.totalorder %s14, 1
    %p84 = por %p82, %p83
    %p86 = scmp.ne.s32.totalorder %s69, %s85
    %p87 = scmp.eq.s32.totalorder %s14, 0
    %p88 = por %p86, %p87
    %p89 = scmp.le.s32.totalorder 1, %s8
    %p90 = scmp.lt.s32.totalorder %s8, 3
    %p91 = pnand %p89, %p90
    %p92 = pneg %p91
    // Predicated region
    $region9: #{_bbox_forward.1} parent=5 // pred_check
      _
    $region10: #{_bbox_forward.1} parent=5 // pred_check_branch
      %94 = sbr.rel (%p91) target = $region12
    $region11: #{_bbox_forward.1} parent=5 // pred_region
      %s95 = ssub.s32 %s8, 1
      // Predicated region
      $region13: #{_bbox_forward.1} parent=11 // pred_check
        %p96 = pneg %p55
      $region14: #{_bbox_forward.1} parent=11 // pred_check_branch
        %98 = sbr.rel (%p96) target = $region16
      $region15: #{_bbox_forward.1} parent=11 // pred_region
        _
      $region16: #{_bbox_forward.1} parent=11 // pred_fallthru
        _
    $region12: #{_bbox_forward.1} parent=5 // pred_fallthru
      _
    %p99 = scmp.lt.s32.totalorder %s8, 2
    // Predicated region
    $region17: #{_bbox_forward.1} parent=5 // pred_check
      %p100 = pneg %p99
    $region18: #{_bbox_forward.1} parent=5 // pred_check_branch
      %102 = sbr.rel (%p100) target = $region20
    $region19: #{_bbox_forward.1} parent=5 // pred_region
      // Predicated region
      $region21: #{_bbox_forward.1} parent=19 // pred_check
        %p103 = pneg %p28
      $region22: #{_bbox_forward.1} parent=19 // pred_check_branch
        %105 = sbr.rel (%p103) target = $region24
      $region23: #{_bbox_forward.1} parent=19 // pred_region
        %p106 = scmp.lt.s32.totalorder %s8, 1
        %s107 = scalar_select %p106, %s8, 1
        %s108 = smul.addr %s107, 3
        %s109 = smul.addr %s108, 8
        %s110 = scalar_lea.vmem %s0, %s109
      $region24: #{_bbox_forward.1} parent=19 // pred_fallthru
        _
    $region20: #{_bbox_forward.1} parent=5 // pred_fallthru
      _
    %p111 = scmp.le.s32.totalorder 1, %s8
    %p112 = scmp.lt.s32.totalorder %s8, 3
    %p113 = pnand %p111, %p112
    %p114 = pneg %p113
    // Predicated region
    $region25: #{_bbox_forward.1} parent=5 // pred_check
      _
    $region26: #{_bbox_forward.1} parent=5 // pred_check_branch
      %116 = sbr.rel (%p113) target = $region28
    $region27: #{_bbox_forward.1} parent=5 // pred_region
      %s117 = ssub.s32 %s8, 1
      %p118 = scmp.lt.s32.totalorder %s13, 1
      %s119 = scalar_select %p118, %s13, 1
      %s120 = smul.addr %s119, 3
      %s121 = smul.addr %s120, 8
      %s122 = scalar_lea.vmem %s0, %s121
      %p123 = pneg %p34
      %p124 = pneg %p31
      %p125 = pneg %p55
      %p126 = pneg %p52
      %p127 = pneg %p81
      %p128 = pneg %p78
      %p129 = scmp.lt.s32.totalorder %s13, 1
      %s130 = scalar_select %p129, %s13, 1
      %s131 = smul.addr %s130, 3
      %s132 = smul.addr %s131, 8
      %s133 = scalar_lea.vmem %s2, %s132
      %p134 = scmp.lt.s32.totalorder %s13, 1
      %s135 = scalar_select %p134, %s13, 1
      %s136 = smul.addr %s135, 3
      %s137 = smul.addr %s136, 8
      %s138 = scalar_lea.vmem %s0, %s137
      %p139 = scmp.lt.s32.totalorder %s13, 1
      %s140 = scalar_select %p139, %s13, 1
      %s141 = smul.addr %s140, 3
      %s142 = smul.addr %s141, 8
      %s143 = scalar_lea.vmem %s2, %s142
      %v144 = vld [vmem:[%s138] sm:$0xff]
      %v145 = vld [vmem:[%s138 + $0x8] sm:$0xff]
      %v146 = vld [vmem:[%s138 + $0x10] sm:$0xff]
      %v147 = vld [vmem:[%s1] ss:$2 sm:$0x7]
      %s148 = scalar_lea.vmem %s1, 1
      %v149 = vld [vmem:[%s148] ss:$2 sm:$0x7]
      %v151 = vperm.slane %v147, 0
      %v152 = vperm.slane %v147, 1
      %v153 = vperm.slane %v147, 2
      %v157 = vsub.f32 %v144, %v151
      %v158 = vsub.f32 %v145, %v152
      %v159 = vsub.f32 %v146, %v153
      %v161 = vperm.slane %v149, 0
      %v162 = vperm.slane %v149, 1
      %v163 = vperm.slane %v149, 2
      %v167 = vmul.f32 %v157, %v161
      %v168 = vmul.f32 %v158, %v162
      %v169 = vmul.f32 %v159, %v163
      %170 = vst [vmem:[%s143] sm:$0xff] %v167
      %171 = vst [vmem:[%s143 + $0x8] sm:$0xff] %v168
      %172 = vst [vmem:[%s143 + $0x10] sm:$0xff] %v169
      %p173 = scmp.lt.s32.totalorder %s13, 1
      %s174 = scalar_select %p173, %s13, 1
      %s175 = smul.addr %s174, 3
      %s176 = smul.addr %s175, 8
      %s177 = scalar_lea.vmem %s2, %s176
      // Predicated region
      $region29: #{_bbox_forward.1} parent=27 // pred_check
        %p178 = pneg %p78
      $region30: #{_bbox_forward.1} parent=27 // pred_check_branch
        %180 = sbr.rel (%p178) target = $region32
      $region31: #{_bbox_forward.1} parent=27 // pred_region
        _
      $region32: #{_bbox_forward.1} parent=27 // pred_fallthru
        _
    $region28: #{_bbox_forward.1} parent=5 // pred_fallthru
      _
    %p181 = scmp.le.s32.totalorder 2, %s8
    // Predicated region
    $region33: #{_bbox_forward.1} parent=5 // pred_check
      %p182 = pneg %p181
    $region34: #{_bbox_forward.1} parent=5 // pred_check_branch
      %184 = sbr.rel (%p182) target = $region36
    $region35: #{_bbox_forward.1} parent=5 // pred_region
      %s185 = ssub.s32 %s8, 2
      // Predicated region
      $region37: #{_bbox_forward.1} parent=35 // pred_check
        %p186 = pneg %p84
      $region38: #{_bbox_forward.1} parent=35 // pred_check_branch
        %188 = sbr.rel (%p186) target = $region40
      $region39: #{_bbox_forward.1} parent=35 // pred_region
        %p189 = scmp.lt.s32.totalorder %s14, 1
        %s190 = scalar_select %p189, %s14, 1
        %s191 = smul.addr %s190, 3
        %s192 = smul.addr %s191, 8
        %s193 = scalar_lea.vmem %s2, %s192
      $region40: #{_bbox_forward.1} parent=35 // pred_fallthru
        _
    $region36: #{_bbox_forward.1} parent=5 // pred_fallthru
      _
  $region6: #{_bbox_forward.1} parent=0 // loop_footer
    %s12 = sadd.s32 1, %s8
  $region7: #{_bbox_forward.1} parent=0 // loop_footer_branch
    %7 = sbr.rel target = $region3
  $region8: #{_bbox_forward.1} parent=0 // loop_exit
    _

</llo_original>
